<compile_context>
chip_gen: v7x
topology: tpu7x:2x2x1
jax: 0.10.0
libtpu: 0.0.40
codegen_flags: <defaults>
</compile_context>

<pallas_src>
import jax
import jax.numpy as jnp
from jax.experimental import pallas as pl
from jax.experimental.pallas import tpu as pltpu

LANES = 128
BATCH_GRAN = 16  # bf16 sublane packing => batch tiles in multiples of 16 rows


def moe_kernel(x_ref, gw_ref, gb_ref, w_ref, eb_ref, out_ref, gate_sc, acc_sc):
    # x_ref:  [TB, Fin] bf16     gw_ref: [Fin, E] bf16     gb_ref: [1, E] f32
    # w_ref:  [Fin, Fp] bf16 (expert e)   eb_ref: [1, Fp] f32 (expert e)
    # out_ref:[TB, Fp] f32       gate_sc: [TB, E] f32      acc_sc: [TB, Fp] f32
    e = pl.program_id(1)
    n_e = pl.num_programs(1)

    # --- once per batch tile: gating network + stable softmax (f32), zero acc ---
    @pl.when(e == 0)
    def _init():
        logits = jnp.dot(x_ref[...], gw_ref[...],
                         preferred_element_type=jnp.float32) + gb_ref[...]   # [TB, E]
        logits = logits - jnp.max(logits, axis=-1, keepdims=True)
        ex = jnp.exp(logits)
        gate_sc[...] = ex * pl.reciprocal(
            jnp.sum(ex, axis=-1, keepdims=True), approx=True)
        acc_sc[...] = jnp.zeros_like(acc_sc)

    # --- this expert's matmul on the MXU (bf16 in, f32 accumulate) ---
    y = jnp.dot(x_ref[...], w_ref[...], preferred_element_type=jnp.float32)  # [TB, Fp]

    # Gate column e via a one-hot lane mask + tiny lane reduction (XLU);
    # avoids a dynamic lane slice on the scratch ref.
    gate = gate_sc[...]                                                       # [TB, E]
    lane = jax.lax.broadcasted_iota(jnp.int32, gate.shape, 1)
    g_e = jnp.sum(jnp.where(lane == e, gate, 0.0), axis=-1, keepdims=True)    # [TB, 1]

    # Gated accumulate; bias added per expert on the VPU (free under MXU slack).
    acc_sc[...] += g_e * (y + eb_ref[...])

    # --- finalize: write the lane-dense output tile once per batch tile ---
    @pl.when(e == n_e - 1)
    def _store():
        out_ref[...] = acc_sc[...].astype(out_ref.dtype)


def prepare_moe_params(gate_w, gate_b, expert_w, expert_b):
    """One-time weight preprocessing (hoisted out of the forward pass).

    gate_w: [Fin, E]; gate_b: [E] or [1, E];
    expert_w: [E, Fin, Fout]; expert_b: [E, Fout].
    """
    E, Fin, Fout = expert_w.shape
    Fp = ((Fout + LANES - 1) // LANES) * LANES  # lane-dense padded output features
    w_all = jnp.zeros((E, Fin, Fp), jnp.bfloat16).at[:, :, :Fout].set(
        expert_w.astype(jnp.bfloat16))
    b_all = jnp.zeros((E, 1, Fp), jnp.float32).at[:, 0, :Fout].set(
        expert_b.astype(jnp.float32))
    return {
        "gate_w": gate_w.astype(jnp.bfloat16),                 # [Fin, E]
        "gate_b": jnp.reshape(gate_b, (1, E)).astype(jnp.float32),
        "expert_w": w_all,                                     # [E, Fin, Fp] bf16
        "expert_b": b_all,                                     # [E, 1, Fp]  f32
        "fout": Fout,
    }


def moe_forward(x, params, *, block_b=512):
    """x: [B, Fin] f32; params from prepare_moe_params."""
    B, Fin = x.shape
    gw, gb = params["gate_w"], params["gate_b"]
    w_all, b_all = params["expert_w"], params["expert_b"]
    Fout = params["fout"]
    E, _, Fp = w_all.shape

    # Batch tile: multiple of 16 sublanes (bf16 packing); adapt down for small B.
    block_b = max(BATCH_GRAN, (block_b // BATCH_GRAN) * BATCH_GRAN)
    if B >= block_b:
        TB = block_b
    else:
        TB = ((B + BATCH_GRAN - 1) // BATCH_GRAN) * BATCH_GRAN
    nb = (B + TB - 1) // TB
    B_pad = nb * TB

    x = x.astype(jnp.bfloat16)
    if B_pad != B:
        x = jnp.zeros((B_pad, Fin), jnp.bfloat16).at[:B].set(x)

    flops = (2 * B_pad * Fin * E              # gate matmul
             + 2 * B_pad * Fin * Fp * E       # per-expert matmuls
             + 3 * B_pad * E * Fp)            # gating mul + bias add + accumulate
    bytes_accessed = (x.size * 2 + w_all.size * 2 + b_all.size * 4
                      + gw.size * 2 + gb.size * 4 + B_pad * Fp * 4)

    out_p = pl.pallas_call(
        moe_kernel,
        out_shape=jax.ShapeDtypeStruct((B_pad, Fp), jnp.float32),
        grid=(nb, E),                                   # expert (reduction) axis innermost
        in_specs=[
            pl.BlockSpec((TB, Fin), lambda i, e: (i, 0)),          # x tile (pipelined, held across e)
            pl.BlockSpec((Fin, E), lambda i, e: (0, 0)),           # gate W (constant, tiny)
            pl.BlockSpec((1, E), lambda i, e: (0, 0)),             # gate b (constant, tiny)
            pl.BlockSpec((None, Fin, Fp), lambda i, e: (e, 0, 0)), # expert e weights (pipelined)
            pl.BlockSpec((None, 1, Fp), lambda i, e: (e, 0, 0)),   # expert e bias   (pipelined)
        ],
        out_specs=pl.BlockSpec((TB, Fp), lambda i, e: (i, 0)),     # lane-dense output tile
        scratch_shapes=[
            pltpu.VMEM((TB, E), jnp.float32),    # gate (per batch tile)
            pltpu.VMEM((TB, Fp), jnp.float32),   # f32 accumulator across experts
        ],
        compiler_params=pltpu.CompilerParams(
            dimension_semantics=("parallel", "arbitrary"),
            vmem_limit_bytes=48 * 1024 * 1024,
        ),
        cost_estimate=pl.CostEstimate(
            flops=int(flops),
            transcendentals=int(B_pad * E),
            bytes_accessed=int(bytes_accessed),
        ),
    )(x, gw, gb, w_all, b_all)

    return out_p[:B, :Fout]


def moe_reference(x, gate_w, gate_b, expert_w, expert_b):
    gate = jax.nn.softmax(x @ gate_w + gate_b, axis=-1)                    # [B, E]
    expert_outs = jnp.einsum("bi,eio->beo", x, expert_w) + expert_b[None]  # [B, E, Fout]
    return jnp.sum(expert_outs * gate[..., None], axis=1)                  # [B, Fout]


if __name__ == "__main__":
    num_experts = 4
    batch_size = 10
    in_features = 3
    out_features = 5  # "input_channels" in the PyTorch script

    key = jax.random.PRNGKey(0)
    kx, kgw, kgb, kew, keb, kx2 = jax.random.split(key, 6)

    x = jax.random.normal(kx, (batch_size, in_features), dtype=jnp.float32)
    gate_w = jax.random.normal(kgw, (in_features, num_experts), dtype=jnp.float32) * 0.5
    gate_b = jax.random.normal(kgb, (1, num_experts), dtype=jnp.float32) * 0.1
    expert_w = jax.random.normal(kew, (num_experts, in_features, out_features),
                                 dtype=jnp.float32) * 0.5
    expert_b = jax.random.normal(keb, (num_experts, out_features), dtype=jnp.float32) * 0.1

    params = prepare_moe_params(gate_w, gate_b, expert_w, expert_b)  # one-time prep

    # Small spec-sized batch (B=10 -> one 16-row tile, E=4 expert grid steps).
    out = moe_forward(x, params, block_b=16)
    out = jax.block_until_ready(out)
    ref = moe_reference(x, gate_w, gate_b, expert_w, expert_b)
    assert out.shape == (batch_size, out_features)
    # bf16 matmul inputs + approx reciprocal -> looser-than-f32 tolerance.
    assert jnp.allclose(out, ref, atol=2e-2, rtol=2e-2), float(jnp.max(jnp.abs(out - ref)))

    # Larger batch exercising the multi-tile batch grid (B=40 -> 3 tiles of 16, padded).
    x2 = jax.random.normal(kx2, (40, in_features), dtype=jnp.float32)
    out2 = jax.block_until_ready(moe_forward(x2, params, block_b=16))
    ref2 = moe_reference(x2, gate_w, gate_b, expert_w, expert_b)
    assert out2.shape == (40, out_features)
    assert jnp.allclose(out2, ref2, atol=2e-2, rtol=2e-2), float(jnp.max(jnp.abs(out2 - ref2)))

    # TODO(synk): the PyTorch forward prints gate/expert debug tensors; printing is
    # host-side glue and is intentionally omitted from the kernel.
    print("KERNEL_OK")
</pallas_src>

<mosaic_0001>
module attributes {stable_mosaic.version = 11 : i64} {
  func.func @moe_kernel(%arg0: i32, %arg1: i32, %arg2: memref<16x3xbf16, #tpu.memory_space<vmem>>, %arg3: memref<3x4xbf16, #tpu.memory_space<vmem>>, %arg4: memref<1x4xf32, #tpu.memory_space<vmem>>, %arg5: memref<1x3x128xbf16, #tpu.memory_space<vmem>>, %arg6: memref<1x1x128xf32, #tpu.memory_space<vmem>>, %arg7: memref<16x128xf32, #tpu.memory_space<vmem>>, %arg8: memref<16x4xf32, #tpu.memory_space<vmem>>, %arg9: memref<16x128xf32, #tpu.memory_space<vmem>>) attributes {dimension_semantics = [#tpu.dimension_semantics<parallel>, #tpu.dimension_semantics<arbitrary>], iteration_bounds = array<i64: 1, 4>, scalar_prefetch = 0 : i64, scratch_operands = 2 : i64, tpu.core_type = #tpu.core_type<tc>, window_params = [{transform_indices = @transform_0, window_bounds = array<i64: 16, 3>}, {pipeline_mode = #tpu.pipeline_mode<synchronous>, transform_indices = @transform_1, window_bounds = array<i64: 3, 4>}, {pipeline_mode = #tpu.pipeline_mode<synchronous>, transform_indices = @transform_2, window_bounds = array<i64: 1, 4>}, {transform_indices = @transform_3, window_bounds = array<i64: 1, 3, 128>}, {transform_indices = @transform_4, window_bounds = array<i64: 1, 1, 128>}, {transform_indices = @transform_5, window_bounds = array<i64: 16, 128>}]} {
    %c0_i32 = arith.constant 0 : i32
    %0 = arith.cmpi eq, %arg1, %c0_i32 : i32
    %1 = arith.extui %0 : i1 to i32
    %c0_i32_0 = arith.constant 0 : i32
    %2 = arith.cmpi ne, %1, %c0_i32_0 : i32
    scf.if %2 {
      %c0_17 = arith.constant 0 : index
      %c0_18 = arith.constant 0 : index
      %27 = vector.load %arg2[%c0_17, %c0_18] : memref<16x3xbf16, #tpu.memory_space<vmem>>, vector<16x3xbf16>
      %c0_19 = arith.constant 0 : index
      %c0_20 = arith.constant 0 : index
      %28 = vector.load %arg3[%c0_19, %c0_20] : memref<3x4xbf16, #tpu.memory_space<vmem>>, vector<3x4xbf16>
      %cst_21 = arith.constant dense<0.000000e+00> : vector<16x4xf32>
      %29 = tpu.matmul %27, %28, %cst_21 {dimension_numbers = #tpu.dot_dimension_numbers<[1], [0], [0], [1], [0, 0, 1, 1], [], []>} : vector<16x3xbf16>, vector<3x4xbf16>, vector<16x4xf32> -> vector<16x4xf32>
      %c0_22 = arith.constant 0 : index
      %c0_23 = arith.constant 0 : index
      %30 = vector.load %arg4[%c0_22, %c0_23] : memref<1x4xf32, #tpu.memory_space<vmem>>, vector<1x4xf32>
      %31 = vector.broadcast %30 : vector<1x4xf32> to vector<16x4xf32>
      %32 = arith.addf %29, %31 : vector<16x4xf32>
      %cst_24 = arith.constant dense<0xFF800000> : vector<16xf32>
      %33 = vector.multi_reduction <maximumf>, %32, %cst_24 [1] : vector<16x4xf32> to vector<16xf32>
      %34 = vector.shape_cast %33 : vector<16xf32> to vector<16x1xf32>
      %35 = vector.broadcast %34 : vector<16x1xf32> to vector<16x4xf32>
      %36 = arith.subf %32, %35 : vector<16x4xf32>
      %37 = math.exp %36 : vector<16x4xf32>
      %cst_25 = arith.constant dense<0.000000e+00> : vector<16xf32>
      %38 = vector.multi_reduction <add>, %37, %cst_25 [1] : vector<16x4xf32> to vector<16xf32>
      %39 = vector.shape_cast %38 : vector<16xf32> to vector<16x1xf32>
      %40 = tpu.reciprocal %39 {approx = true} : vector<16x1xf32> -> vector<16x1xf32>
      %41 = vector.broadcast %40 : vector<16x1xf32> to vector<16x4xf32>
      %42 = arith.mulf %37, %41 : vector<16x4xf32>
      %c0_26 = arith.constant 0 : index
      %c0_27 = arith.constant 0 : index
      %43 = vector.load %arg8[%c0_26, %c0_27] : memref<16x4xf32, #tpu.memory_space<vmem>>, vector<16x4xf32>
      tpu.vector_store %arg8[%c0_26, %c0_27], %42 {strides = array<i32>} : memref<16x4xf32, #tpu.memory_space<vmem>>, vector<16x4xf32>,
      %cst_28 = arith.constant 0.000000e+00 : f32
      %44 = vector.broadcast %cst_28 : f32 to vector<16x128xf32>
      %c0_29 = arith.constant 0 : index
      %c0_30 = arith.constant 0 : index
      %45 = vector.load %arg9[%c0_29, %c0_30] : memref<16x128xf32, #tpu.memory_space<vmem>>, vector<16x128xf32>
      tpu.vector_store %arg9[%c0_29, %c0_30], %44 {strides = array<i32>} : memref<16x128xf32, #tpu.memory_space<vmem>>, vector<16x128xf32>,
    } else {
    }
    %c0 = arith.constant 0 : index
    %c0_1 = arith.constant 0 : index
    %3 = vector.load %arg2[%c0, %c0_1] : memref<16x3xbf16, #tpu.memory_space<vmem>>, vector<16x3xbf16>
    %c0_2 = arith.constant 0 : index
    %c0_3 = arith.constant 0 : index
    %c0_4 = arith.constant 0 : index
    %4 = vector.load %arg5[%c0_2, %c0_3, %c0_4] : memref<1x3x128xbf16, #tpu.memory_space<vmem>>, vector<1x3x128xbf16>
    %5 = vector.shape_cast %4 : vector<1x3x128xbf16> to vector<3x128xbf16>
    %cst = arith.constant dense<0.000000e+00> : vector<16x128xf32>
    %6 = tpu.matmul %3, %5, %cst {dimension_numbers = #tpu.dot_dimension_numbers<[1], [0], [0], [1], [0, 0, 1, 1], [], []>} : vector<16x3xbf16>, vector<3x128xbf16>, vector<16x128xf32> -> vector<16x128xf32>
    %c0_5 = arith.constant 0 : index
    %c0_6 = arith.constant 0 : index
    %7 = vector.load %arg8[%c0_5, %c0_6] : memref<16x4xf32, #tpu.memory_space<vmem>>, vector<16x4xf32>
    %8 = tpu.iota {dimensions = array<i32: 1>} : vector<16x4xi32>
    %9 = vector.broadcast %arg1 : i32 to vector<16x4xi32>
    %10 = arith.cmpi eq, %8, %9 : vector<16x4xi32>
    %cst_7 = arith.constant 0.000000e+00 : f32
    %11 = vector.broadcast %cst_7 : f32 to vector<16x4xf32>
    %12 = arith.select %10, %7, %11 : vector<16x4xi1>, vector<16x4xf32>
    %cst_8 = arith.constant dense<0.000000e+00> : vector<16xf32>
    %13 = vector.multi_reduction <add>, %12, %cst_8 [1] : vector<16x4xf32> to vector<16xf32>
    %14 = vector.shape_cast %13 : vector<16xf32> to vector<16x1xf32>
    %c0_9 = arith.constant 0 : index
    %c0_10 = arith.constant 0 : index
    %15 = vector.load %arg9[%c0_9, %c0_10] : memref<16x128xf32, #tpu.memory_space<vmem>>, vector<16x128xf32>
    %c0_11 = arith.constant 0 : index
    %c0_12 = arith.constant 0 : index
    %c0_13 = arith.constant 0 : index
    %16 = vector.load %arg6[%c0_11, %c0_12, %c0_13] : memref<1x1x128xf32, #tpu.memory_space<vmem>>, vector<1x1x128xf32>
    %17 = vector.shape_cast %16 : vector<1x1x128xf32> to vector<1x128xf32>
    %18 = vector.broadcast %17 : vector<1x128xf32> to vector<16x128xf32>
    %19 = arith.addf %6, %18 : vector<16x128xf32>
    %20 = vector.broadcast %14 : vector<16x1xf32> to vector<16x128xf32>
    %21 = arith.mulf %20, %19 : vector<16x128xf32>
    %22 = arith.addf %15, %21 : vector<16x128xf32>
    %c0_14 = arith.constant 0 : index
    %c0_15 = arith.constant 0 : index
    %23 = vector.load %arg9[%c0_14, %c0_15] : memref<16x128xf32, #tpu.memory_space<vmem>>, vector<16x128xf32>
    tpu.vector_store %arg9[%c0_14, %c0_15], %22 {strides = array<i32>} : memref<16x128xf32, #tpu.memory_space<vmem>>, vector<16x128xf32>,
    %c3_i32 = arith.constant 3 : i32
    %24 = arith.cmpi eq, %arg1, %c3_i32 : i32
    %25 = arith.extui %24 : i1 to i32
    %c0_i32_16 = arith.constant 0 : i32
    %26 = arith.cmpi ne, %25, %c0_i32_16 : i32
    scf.if %26 {
      %c0_17 = arith.constant 0 : index
      %c0_18 = arith.constant 0 : index
      %27 = vector.load %arg9[%c0_17, %c0_18] : memref<16x128xf32, #tpu.memory_space<vmem>>, vector<16x128xf32>
      %c0_19 = arith.constant 0 : index
      %c0_20 = arith.constant 0 : index
      %28 = vector.load %arg7[%c0_19, %c0_20] : memref<16x128xf32, #tpu.memory_space<vmem>>, vector<16x128xf32>
      tpu.vector_store %arg7[%c0_19, %c0_20], %27 {strides = array<i32>} : memref<16x128xf32, #tpu.memory_space<vmem>>, vector<16x128xf32>,
    } else {
    }
    return
  }
  func.func @transform_0(%arg0: i32, %arg1: i32) -> (i32, i32) {
    %c0_i32 = arith.constant 0 : i32
    %c0_i32_0 = arith.constant 0 : i32
    return %arg0, %c0_i32 : i32, i32
  }
  func.func @transform_1(%arg0: i32, %arg1: i32) -> (i32, i32) {
    %c0_i32 = arith.constant 0 : i32
    %c0_i32_0 = arith.constant 0 : i32
    %c0_i32_1 = arith.constant 0 : i32
    return %c0_i32, %c0_i32_0 : i32, i32
  }
  func.func @transform_2(%arg0: i32, %arg1: i32) -> (i32, i32) {
    %c0_i32 = arith.constant 0 : i32
    %c0_i32_0 = arith.constant 0 : i32
    %c0_i32_1 = arith.constant 0 : i32
    return %c0_i32, %c0_i32_0 : i32, i32
  }
  func.func @transform_3(%arg0: i32, %arg1: i32) -> (i32, i32, i32) {
    %c0_i32 = arith.constant 0 : i32
    %c0_i32_0 = arith.constant 0 : i32
    %c0_i32_1 = arith.constant 0 : i32
    return %arg1, %c0_i32, %c0_i32_0 : i32, i32, i32
  }
  func.func @transform_4(%arg0: i32, %arg1: i32) -> (i32, i32, i32) {
    %c0_i32 = arith.constant 0 : i32
    %c0_i32_0 = arith.constant 0 : i32
    %c0_i32_1 = arith.constant 0 : i32
    return %arg1, %c0_i32, %c0_i32_0 : i32, i32, i32
  }
  func.func @transform_5(%arg0: i32, %arg1: i32) -> (i32, i32) {
    %c0_i32 = arith.constant 0 : i32
    %c0_i32_0 = arith.constant 0 : i32
    return %arg0, %c0_i32 : i32, i32
  }
}

</mosaic_0001>

<llo_original>
// kernel: tpu_custom_call.1
$region0: #{tpu_custom_call.1}
  #allocation0 [shape = 'u32[]', space=smem, size = 0x4, offset = 0x4, fixed_abs, tag = 'smem constant byte address 0x4 - core index']
  #allocation1 [shape = 'u32[144,128]{1,0:T(1,128)}', space=vmem, size = 0x12000, scoped, tag = 'internal scratch']
  #allocation2 [shape = 'f32[16,4]{1,0:T(8,128)}', space=vmem, size = 0x2000, scoped, tag = 'scratch operand']
  #allocation3 [shape = 'f32[16,128]{1,0:T(8,128)}', space=vmem, size = 0x2000, scoped, tag = 'scratch operand']
  %s0 = inlined_call_operand.vmem [shape: bf16[16,3], index: 0, kind: input, shape index: {}]
  %s1 = inlined_call_operand.vmem [shape: bf16[3,4], index: 1, kind: input, shape index: {}]
  %s2 = inlined_call_operand.vmem [shape: f32[1,4], index: 2, kind: input, shape index: {}]
  %s3 = inlined_call_operand.vmem [shape: bf16[4,3,128], index: 3, kind: input, shape index: {}]
  %s4 = inlined_call_operand.vmem [shape: f32[4,1,128], index: 4, kind: input, shape index: {}]
  %s5 = inlined_call_operand.hbm [shape: f32[16,128], index: 5, kind: output, shape index: {}]
  %s6 = sld [smem:[#allocation0]]
  $region61: #{tpu_custom_call.1} parent=0
    _
  %s8 = ssub.s32 1, %s6
  %s9 = scalar_select 0, %s8, %s6
  $region1: #{tpu_custom_call.1} parent=0
    #allocation4 [shape = 'u8[8192]{0}', space=vmem, size = 0x2000, scoped, tag = 'output window, operand 0, single buffered']
    #allocation5 [shape = 's32[2]{0}', space=sflag, size = 0x8, scoped, tag = 'scoped memory for tpu_custom_call.1']
    %10 = vsyncpa [#allocation5], 0
    loop: start=0, step=1, limit=6
    $region2: #{tpu_custom_call.1} parent=1 // loop_pre_header
      _
    $region3: #{tpu_custom_call.1} parent=1 // loop_header
      %s12 = sphi 0, %s16
      %p13 = scmp.ge.s32.totalorder %s12, 6
      %s19 = sphi 0, %s31
      %s20 = sphi 0, %s27
      %s21 = sphi 0, %s19
      %s22 = sphi 0, %s20
      %s23 = sphi 0, %s21
      %s24 = sphi 0, %s22
      %s34 = sphi 0, %s36
      %s37 = sphi 0, %s34
      %s38 = sphi 0, %s37
      %s54 = sphi 0, %s38
      %s58 = sphi 0, %s58
      %s60 = sphi 0, %s58
      %s61 = sphi 0, %s60
      %s75 = sphi 0, %s61
      %s79 = sphi 0, %s79
      %s81 = sphi 0, %s79
      %s82 = sphi 0, %s81
      %s96 = sphi 0, %s82
      %s102 = sphi 0, %s104
      %s105 = sphi 0, %s102
      %s106 = sphi 0, %s105
      %s122 = sphi 0, %s106
      %s128 = sphi 0, %s130
      %s131 = sphi 0, %s128
      %s132 = sphi 0, %s131
      %s148 = sphi 0, %s132
      %s154 = sphi 0, %s156
      %s157 = sphi 0, %s154
      %s158 = sphi 0, %s157
      %s174 = sphi 0, %s158
    $region4: #{tpu_custom_call.1} parent=1 // loop_header_branch
      %15 = sbr.rel (%p13) target = $region8
    $region5: #{tpu_custom_call.1} parent=1 // loop_body
      %s17 = ssub.s32 %s12, 1
      %s18 = ssub.s32 %s12, 2
      %s25 = sadd.s32 1, %s20
      %p26 = scmp.ge.s32.totalorder %s25, 4
      %s27 = scalar_select %p26, 0, %s25
      %s28 = sadd.s32 1, %s19
      %s29 = scalar_select %p26, %s28, %s19
      %p30 = scmp.ge.s32.totalorder %s29, 1
      %s31 = scalar_select %p30, 0, %s29
      %s32 = ssub.s32 %s19, %s31
      %p33 = scmp.eq.s32.totalorder %s32, 0
      %s35 = sadd.s32 %s34, 1
      %s36 = scalar_select %p33, %s34, %s35
      %p39 = pneg %p33
      %p40 = scmp.eq.s32.totalorder %s12, 3
      %p41 = por %p39, %p40
      %p42 = scmp.ne.s32.totalorder %s34, %s37
      %p43 = scmp.eq.s32.totalorder %s12, 0
      %p44 = por %p42, %p43
      %p45 = scmp.ne.s32.totalorder %s34, %s37
      %p46 = scmp.eq.s32.totalorder %s17, 3
      %p47 = por %p45, %p46
      %p48 = scmp.ne.s32.totalorder %s37, %s38
      %p49 = scmp.eq.s32.totalorder %s17, 0
      %p50 = por %p48, %p49
      %p51 = scmp.ne.s32.totalorder %s37, %s38
      %p52 = scmp.eq.s32.totalorder %s18, 3
      %p53 = por %p51, %p52
      %p55 = scmp.ne.s32.totalorder %s38, %s54
      %p56 = scmp.eq.s32.totalorder %s18, 0
      %p57 = por %p55, %p56
      %s59 = sadd.s32 %s58, 1
      %p62 = scmp.eq.s32.totalorder %s12, 3
      %p63 = scmp.ne.s32.totalorder %s58, %s60
      %p64 = scmp.eq.s32.totalorder %s12, 0
      %p65 = por %p63, %p64
      %p66 = scmp.ne.s32.totalorder %s58, %s60
      %p67 = scmp.eq.s32.totalorder %s17, 3
      %p68 = por %p66, %p67
      %p69 = scmp.ne.s32.totalorder %s60, %s61
      %p70 = scmp.eq.s32.totalorder %s17, 0
      %p71 = por %p69, %p70
      %p72 = scmp.ne.s32.totalorder %s60, %s61
      %p73 = scmp.eq.s32.totalorder %s18, 3
      %p74 = por %p72, %p73
      %p76 = scmp.ne.s32.totalorder %s61, %s75
      %p77 = scmp.eq.s32.totalorder %s18, 0
      %p78 = por %p76, %p77
      %s80 = sadd.s32 %s79, 1
      %p83 = scmp.eq.s32.totalorder %s12, 3
      %p84 = scmp.ne.s32.totalorder %s79, %s81
      %p85 = scmp.eq.s32.totalorder %s12, 0
      %p86 = por %p84, %p85
      %p87 = scmp.ne.s32.totalorder %s79, %s81
      %p88 = scmp.eq.s32.totalorder %s17, 3
      %p89 = por %p87, %p88
      %p90 = scmp.ne.s32.totalorder %s81, %s82
      %p91 = scmp.eq.s32.totalorder %s17, 0
      %p92 = por %p90, %p91
      %p93 = scmp.ne.s32.totalorder %s81, %s82
      %p94 = scmp.eq.s32.totalorder %s18, 3
      %p95 = por %p93, %p94
      %p97 = scmp.ne.s32.totalorder %s82, %s96
      %p98 = scmp.eq.s32.totalorder %s18, 0
      %p99 = por %p97, %p98
      %s100 = ssub.s32 %s20, %s27
      %p101 = scmp.eq.s32.totalorder %s100, 0
      %s103 = sadd.s32 %s102, 1
      %s104 = scalar_select %p101, %s102, %s103
      %p107 = pneg %p101
      %p108 = scmp.eq.s32.totalorder %s12, 3
      %p109 = por %p107, %p108
      %p110 = scmp.ne.s32.totalorder %s102, %s105
      %p111 = scmp.eq.s32.totalorder %s12, 0
      %p112 = por %p110, %p111
      %p113 = scmp.ne.s32.totalorder %s102, %s105
      %p114 = scmp.eq.s32.totalorder %s17, 3
      %p115 = por %p113, %p114
      %p116 = scmp.ne.s32.totalorder %s105, %s106
      %p117 = scmp.eq.s32.totalorder %s17, 0
      %p118 = por %p116, %p117
      %p119 = scmp.ne.s32.totalorder %s105, %s106
      %p120 = scmp.eq.s32.totalorder %s18, 3
      %p121 = por %p119, %p120
      %p123 = scmp.ne.s32.totalorder %s106, %s122
      %p124 = scmp.eq.s32.totalorder %s18, 0
      %p125 = por %p123, %p124
      %s126 = ssub.s32 %s20, %s27
      %p127 = scmp.eq.s32.totalorder %s126, 0
      %s129 = sadd.s32 %s128, 1
      %s130 = scalar_select %p127, %s128, %s129
      %p133 = pneg %p127
      %p134 = scmp.eq.s32.totalorder %s12, 3
      %p135 = por %p133, %p134
      %p136 = scmp.ne.s32.totalorder %s128, %s131
      %p137 = scmp.eq.s32.totalorder %s12, 0
      %p138 = por %p136, %p137
      %p139 = scmp.ne.s32.totalorder %s128, %s131
      %p140 = scmp.eq.s32.totalorder %s17, 3
      %p141 = por %p139, %p140
      %p142 = scmp.ne.s32.totalorder %s131, %s132
      %p143 = scmp.eq.s32.totalorder %s17, 0
      %p144 = por %p142, %p143
      %p145 = scmp.ne.s32.totalorder %s131, %s132
      %p146 = scmp.eq.s32.totalorder %s18, 3
      %p147 = por %p145, %p146
      %p149 = scmp.ne.s32.totalorder %s132, %s148
      %p150 = scmp.eq.s32.totalorder %s18, 0
      %p151 = por %p149, %p150
      %s152 = ssub.s32 %s19, %s31
      %p153 = scmp.eq.s32.totalorder %s152, 0
      %s155 = sadd.s32 %s154, 1
      %s156 = scalar_select %p153, %s154, %s155
      %p159 = pneg %p153
      %p160 = scmp.eq.s32.totalorder %s12, 3
      %p161 = por %p159, %p160
      %p162 = scmp.ne.s32.totalorder %s154, %s157
      %p163 = scmp.eq.s32.totalorder %s12, 0
      %p164 = por %p162, %p163
      %p165 = scmp.ne.s32.totalorder %s154, %s157
      %p166 = scmp.eq.s32.totalorder %s17, 3
      %p167 = por %p165, %p166
      %p168 = scmp.ne.s32.totalorder %s157, %s158
      %p169 = scmp.eq.s32.totalorder %s17, 0
      %p170 = por %p168, %p169
      %p171 = scmp.ne.s32.totalorder %s157, %s158
      %p172 = scmp.eq.s32.totalorder %s18, 3
      %p173 = por %p171, %p172
      %p175 = scmp.ne.s32.totalorder %s158, %s174
      %p176 = scmp.eq.s32.totalorder %s18, 0
      %p177 = por %p175, %p176
      %p178 = scmp.le.s32.totalorder 1, %s12
      %p179 = scmp.lt.s32.totalorder %s12, 5
      %p180 = pnand %p178, %p179
      %p181 = pneg %p180
      // Predicated region
      $region9: #{tpu_custom_call.1} parent=5 // pred_check
        _
      $region10: #{tpu_custom_call.1} parent=5 // pred_check_branch
        %183 = sbr.rel (%p180) target = $region12
      $region11: #{tpu_custom_call.1} parent=5 // pred_region
        %s184 = ssub.s32 %s12, 1
        // Predicated region
        $region13: #{tpu_custom_call.1} parent=11 // pred_check
          %p185 = pneg %p50
        $region14: #{tpu_custom_call.1} parent=11 // pred_check_branch
          %187 = sbr.rel (%p185) target = $region16
        $region15: #{tpu_custom_call.1} parent=11 // pred_region
          %s188 = smul.u32 2, %s21
          %p189 = scmp.lt.s32.totalorder %s188, 1
          %s190 = scalar_select %p189, %s188, 1
          %s191 = smul.addr %s190, 4
          %s192 = scalar_lea.vmem %s0, %s191
          %s193 = smul.u32 2, %s21
        $region16: #{tpu_custom_call.1} parent=11 // pred_fallthru
          _
        // Predicated region
        $region17: #{tpu_custom_call.1} parent=11 // pred_check
          %p194 = pneg %p71
        $region18: #{tpu_custom_call.1} parent=11 // pred_check_branch
          %196 = sbr.rel (%p194) target = $region20
        $region19: #{tpu_custom_call.1} parent=11 // pred_region
          _
        $region20: #{tpu_custom_call.1} parent=11 // pred_fallthru
          _
        // Predicated region
        $region21: #{tpu_custom_call.1} parent=11 // pred_check
          %p197 = pneg %p92
        $region22: #{tpu_custom_call.1} parent=11 // pred_check_branch
          %199 = sbr.rel (%p197) target = $region24
        $region23: #{tpu_custom_call.1} parent=11 // pred_region
          _
        $region24: #{tpu_custom_call.1} parent=11 // pred_fallthru
          _
      $region12: #{tpu_custom_call.1} parent=5 // pred_fallthru
        _
      %p200 = scmp.lt.s32.totalorder %s12, 4
      // Predicated region
      $region25: #{tpu_custom_call.1} parent=5 // pred_check
        %p201 = pneg %p200
      $region26: #{tpu_custom_call.1} parent=5 // pred_check_branch
        %203 = sbr.rel (%p201) target = $region28
      $region27: #{tpu_custom_call.1} parent=5 // pred_region
        // Predicated region
        $region29: #{tpu_custom_call.1} parent=27 // pred_check
          %p204 = pneg %p112
        $region30: #{tpu_custom_call.1} parent=27 // pred_check_branch
          %206 = sbr.rel (%p204) target = $region32
        $region31: #{tpu_custom_call.1} parent=27 // pred_region
          %p207 = scmp.lt.s32.totalorder %s20, 3
          %s208 = scalar_select %p207, %s20, 3
          %s209 = smul.addr %s208, 2
          %s210 = scalar_lea.vmem %s3, %s209
        $region32: #{tpu_custom_call.1} parent=27 // pred_fallthru
          _
        // Predicated region
        $region33: #{tpu_custom_call.1} parent=27 // pred_check
          %p211 = pneg %p138
        $region34: #{tpu_custom_call.1} parent=27 // pred_check_branch
          %213 = sbr.rel (%p211) target = $region36
        $region35: #{tpu_custom_call.1} parent=27 // pred_region
          %p214 = scmp.lt.s32.totalorder %s20, 3
          %s215 = scalar_select %p214, %s20, 3
          %s216 = scalar_lea.vmem %s4, %s215
        $region36: #{tpu_custom_call.1} parent=27 // pred_fallthru
          _
      $region28: #{tpu_custom_call.1} parent=5 // pred_fallthru
        _
      %p217 = scmp.le.s32.totalorder 1, %s12
      %p218 = scmp.lt.s32.totalorder %s12, 5
      %p219 = pnand %p217, %p218
      %p220 = pneg %p219
      // Predicated region
      $region37: #{tpu_custom_call.1} parent=5 // pred_check
        _
      $region38: #{tpu_custom_call.1} parent=5 // pred_check_branch
        %222 = sbr.rel (%p219) target = $region40
      $region39: #{tpu_custom_call.1} parent=5 // pred_region
        %s223 = ssub.s32 %s12, 1
        %s224 = smul.u32 2, %s21
        %p225 = scmp.lt.s32.totalorder %s224, 1
        %s226 = scalar_select %p225, %s224, 1
        %s227 = smul.addr %s226, 4
        %s228 = scalar_lea.vmem %s0, %s227
        %p229 = pneg %p50
        %p230 = pneg %p47
        %p231 = pneg %p71
        %p232 = pneg %p68
        %p233 = pneg %p92
        %p234 = pneg %p89
        %p235 = scmp.lt.s32.totalorder %s22, 3
        %s236 = scalar_select %p235, %s22, 3
        %s237 = smul.addr %s236, 2
        %s238 = scalar_lea.vmem %s3, %s237
        %p239 = pneg %p118
        %p240 = pneg %p115
        %p241 = scmp.lt.s32.totalorder %s22, 3
        %s242 = scalar_select %p241, %s22, 3
        %s243 = scalar_lea.vmem %s4, %s242
        %p244 = pneg %p144
        %p245 = pneg %p141
        %p246 = pneg %p170
        %p247 = pneg %p167
        %s248 = smul.u32 2, %s21
        %p249 = scmp.lt.s32.totalorder %s248, 1
        %s250 = scalar_select %p249, %s248, 1
        %s251 = smul.addr %s250, 4
        %s252 = scalar_lea.vmem %s0, %s251
        %s253 = smul.u32 2, %s21
        %p254 = scmp.lt.s32.totalorder %s22, 3
        %s255 = scalar_select %p254, %s22, 3
        %s256 = smul.addr %s255, 2
        %s257 = scalar_lea.vmem %s3, %s256
        %p258 = scmp.lt.s32.totalorder %s22, 3
        %s259 = scalar_select %p258, %s22, 3
        %s260 = scalar_lea.vmem %s4, %s259
        %s261 = smul.u32 2, %s21
        %p263 = scmp.eq.s32.totalorder %s22, 0
        // Predicated region
        $region41: #{tpu_custom_call.1} parent=39 // pred_check
          %p264 = pneg %p263
        $region42: #{tpu_custom_call.1} parent=39 // pred_check_branch
          %266 = sbr.rel (%p264) target = $region44
        $region43: #{tpu_custom_call.1} parent=39 // pred_region
          %v267 = vld [vmem:[%s252] sm:$0xf]
          %v268 = vld [vmem:[%s252 + $0x4] sm:$0xf]
          %v269 = vld [vmem:[%s1] sm:$0x3]
          %v270 = vld [vmem:[%s2] sm:$0x1]
          %v272 = vlaneseq
          %v273 = vshrl.u32 %v272, 7
          %v274 = vsub.s32 0, %v273
          %v275 = vrot.slane %v270, %v274
          %v279 = vunpack.c.l.b16 %v267
          %v280 = vunpack.c.l.b16 %v268
          %v281 = vpack.c.b16 %v280, %v279
          %vm282 = vcmask 23552
          %v284 = vsel %vm282, %v281, 0
          %vm286 = vcmask 1040384
          %vm287 = vcmask 1041408
          %v288 = vsel %vm286, 4294967295, 65535
          %v289 = vsel %vm287, %v288, 0
          %v291 = vand.u32 %v269, %v289
          %293 = vmatprep.subr.bf16.mxu0 0
          %294 = vmatpush1.bf16.msra.mxu0 %v291
          %295 = vmatprep.subr.bf16.mxu0 0
          %296 = vmatpush1.bf16.msra.mxu0 0
          %297 = vmatprep.subr.bf16.mxu0 0
          %298 = vmatpush1.bf16.msra.mxu0 0
          %299 = vmatprep.subr.bf16.mxu0 0
          %300 = vmatpush1.bf16.msra.mxu0 0
          %301 = vmatprep.subr.bf16.mxu0 0
          %302 = vmatpush1.bf16.msra.mxu0 0
          %303 = vmatprep.subr.bf16.mxu0 0
          %304 = vmatpush1.bf16.msra.mxu0 0
          %305 = vmatprep.subr.bf16.mxu0 0
          %306 = vmatpush1.bf16.msra.mxu0 0
          %307 = vmatprep.subr.bf16.mxu0 0
          %308 = vmatpush1.bf16.msra.mxu0 0
          %309 = vmatprep.subr.bf16.mxu0 0
          %310 = vmatpush1.bf16.msra.mxu0 0
          %311 = vmatprep.subr.bf16.mxu0 0
          %312 = vmatpush1.bf16.msra.mxu0 0
          %313 = vmatprep.subr.bf16.mxu0 0
          %314 = vmatpush1.bf16.msra.mxu0 0
          %315 = vmatprep.subr.bf16.mxu0 0
          %316 = vmatpush1.bf16.msra.mxu0 0
          %317 = vmatprep.subr.bf16.mxu0 0
          %318 = vmatpush1.bf16.msra.mxu0 0
          %319 = vmatprep.subr.bf16.mxu0 0
          %320 = vmatpush1.bf16.msra.mxu0 0
          %321 = vmatprep.subr.bf16.mxu0 0
          %322 = vmatpush1.bf16.msra.mxu0 0
          %323 = vmatprep.subr.bf16.mxu0 0
          %324 = vmatpush1.bf16.msra.mxu0 0
          %325 = vmatprep.mubr.bf16.mxu0 0
          %326 = vmatmul.mubr.bf16.gmra.mrb[0].mxu0 %v284
          %v327 = vpop.f32.mrb[0].mxu0
          %v328 = vadd.f32 %v275, %v327
          %v329 = vpop.f32.mrb[0].mxu0
          %v330 = vpop.f32.mrb[0].mxu0
          %v331 = vadd.f32 %v275, %v330
          %v332 = vpop.f32.mrb[0].mxu0
          %333 = vdwg.mxu0
          %vm334 = vcmask 31744
          %v335 = vsel %vm334, %v328, -inf
          %336 = vmax.xlane.f32.xlu0 %v335
          %v337 = vpop.xlane.xlu0 %336
          %v338 = vsel %vm334, %v331, -inf
          %339 = vmax.xlane.f32.xlu0 %v338
          %v340 = vpop.xlane.xlu0 %339
          %v341 = vsub.f32 %v328, %v337
          %v342 = vsub.f32 %v331, %v340
          %v343 = vmul.f32 %v341, 1.442695
          %v344 = vpow.pop %v343
          %v345 = vmul.f32 %v342, 1.442695
          %v346 = vpow.pop %v345
          %v347 = vsel %vm334, %v344, 0.0
          %348 = vadd.xlane.f32.xlu0 %v347
          %v349 = vpop.xlane.xlu0 %348
          %v350 = vsel %vm334, %v346, 0.0
          %351 = vadd.xlane.f32.xlu0 %v350
          %v352 = vpop.xlane.xlu0 %351
          %v353 = vrcp.pop %v349
          %v354 = vrcp.pop %v352
          %v355 = vmul.f32 %v344, %v353
          %v356 = vmul.f32 %v346, %v354
          %357 = vst.msk [vmem:[#allocation2] sm:$0xff] %vm334, %v355
          %358 = vst.msk [vmem:[#allocation2 + $0x8] sm:$0xff] %vm334, %v356
          %359 = vst [vmem:[#allocation3] sm:$0xff] 0.0
          %360 = vst [vmem:[#allocation3 + $0x8] sm:$0xff] 0.0
        $region44: #{tpu_custom_call.1} parent=39 // pred_fallthru
          _
        %v361 = vld [vmem:[%s252] sm:$0xf]
        %v362 = vld [vmem:[%s252 + $0x4] sm:$0xf]
        %v363 = vld [vmem:[%s257] sm:$0x3]
        %v364 = vld [vmem:[#allocation2] sm:$0xff]
        %v365 = vld [vmem:[#allocation2 + $0x8] sm:$0xff]
        %v366 = vlaneseq
        %v367 = vand.u32 %v366, 127
        %v368 = vstv %s22
        %vm369 = vcmp.eq.s32.totalorder %v367, %v368
        %v370 = vsel %vm369, %v364, 0.0
        %v371 = vsel %vm369, %v365, 0.0
        %vm372 = vcmask 31744
        %v373 = vsel %vm372, %v370, 0.0
        %374 = vadd.xlane.f32.xlu0 %v373
        %v375 = vpop.xlane.xlu0 %374
        %v376 = vsel %vm372, %v371, 0.0
        %377 = vadd.xlane.f32.xlu0 %v376
        %v378 = vpop.xlane.xlu0 %377
        %v379 = vld [vmem:[#allocation3] sm:$0xff]
        %v380 = vld [vmem:[#allocation3 + $0x8] sm:$0xff]
        %v381 = vld [vmem:[%s260] sm:$0x1]
        %v383 = vlaneseq
        %v384 = vshrl.u32 %v383, 7
        %v385 = vsub.s32 0, %v384
        %v386 = vrot.slane %v381, %v385
        %v390 = vunpack.c.l.b16 %v361
        %v391 = vunpack.c.l.b16 %v362
        %v392 = vpack.c.b16 %v391, %v390
        %vm393 = vcmask 23552
        %v395 = vsel %vm393, %v392, 0
        %vm397 = vcmask 1040384
        %vm398 = vcmask 1041408
        %v399 = vsel %vm397, 4294967295, 65535
        %v400 = vsel %vm398, %v399, 0
        %v402 = vand.u32 %v363, %v400
        %404 = vmatprep.subr.bf16.mxu0 0
        %405 = vmatpush1.bf16.msra.mxu0 %v402
        %406 = vmatprep.subr.bf16.mxu0 0
        %407 = vmatpush1.bf16.msra.mxu0 0
        %408 = vmatprep.subr.bf16.mxu0 0
        %409 = vmatpush1.bf16.msra.mxu0 0
        %410 = vmatprep.subr.bf16.mxu0 0
        %411 = vmatpush1.bf16.msra.mxu0 0
        %412 = vmatprep.subr.bf16.mxu0 0
        %413 = vmatpush1.bf16.msra.mxu0 0
        %414 = vmatprep.subr.bf16.mxu0 0
        %415 = vmatpush1.bf16.msra.mxu0 0
        %416 = vmatprep.subr.bf16.mxu0 0
        %417 = vmatpush1.bf16.msra.mxu0 0
        %418 = vmatprep.subr.bf16.mxu0 0
        %419 = vmatpush1.bf16.msra.mxu0 0
        %420 = vmatprep.subr.bf16.mxu0 0
        %421 = vmatpush1.bf16.msra.mxu0 0
        %422 = vmatprep.subr.bf16.mxu0 0
        %423 = vmatpush1.bf16.msra.mxu0 0
        %424 = vmatprep.subr.bf16.mxu0 0
        %425 = vmatpush1.bf16.msra.mxu0 0
        %426 = vmatprep.subr.bf16.mxu0 0
        %427 = vmatpush1.bf16.msra.mxu0 0
        %428 = vmatprep.subr.bf16.mxu0 0
        %429 = vmatpush1.bf16.msra.mxu0 0
        %430 = vmatprep.subr.bf16.mxu0 0
        %431 = vmatpush1.bf16.msra.mxu0 0
        %432 = vmatprep.subr.bf16.mxu0 0
        %433 = vmatpush1.bf16.msra.mxu0 0
        %434 = vmatprep.subr.bf16.mxu0 0
        %435 = vmatpush1.bf16.msra.mxu0 0
        %436 = vmatprep.mubr.bf16.mxu0 0
        %437 = vmatmul.mubr.bf16.gmra.mrb[0].mxu0 %v395
        %v438 = vpop.f32.mrb[0].mxu0
        %v439 = vadd.f32 %v386, %v438
        %v440 = vpop.f32.mrb[0].mxu0
        %v441 = vpop.f32.mrb[0].mxu0
        %v442 = vadd.f32 %v386, %v441
        %v443 = vpop.f32.mrb[0].mxu0
        %444 = vdwg.mxu0
        %v445 = vmul.f32 %v375, %v439
        %v446 = vmul.f32 %v378, %v442
        %v447 = vadd.f32 %v379, %v445
        %v448 = vadd.f32 %v380, %v446
        %449 = vst [vmem:[#allocation3] sm:$0xff] %v447
        %450 = vst [vmem:[#allocation3 + $0x8] sm:$0xff] %v448
        %p451 = scmp.eq.s32.totalorder %s22, 3
        // Predicated region
        $region45: #{tpu_custom_call.1} parent=39 // pred_check
          %p452 = pneg %p451
        $region46: #{tpu_custom_call.1} parent=39 // pred_check_branch
          %454 = sbr.rel (%p452) target = $region48
        $region47: #{tpu_custom_call.1} parent=39 // pred_region
          %v455 = vld [vmem:[#allocation3] sm:$0xff]
          %v456 = vld [vmem:[#allocation3 + $0x8] sm:$0xff]
          %457 = vst [vmem:[#allocation4] sm:$0xff] %v455
          %458 = vst [vmem:[#allocation4 + $0x8] sm:$0xff] %v456
        $region48: #{tpu_custom_call.1} parent=39 // pred_fallthru
          _
        // Predicated region
        $region49: #{tpu_custom_call.1} parent=39 // pred_check
          %p459 = pneg %p167
        $region50: #{tpu_custom_call.1} parent=39 // pred_check_branch
          %461 = sbr.rel (%p459) target = $region52
        $region51: #{tpu_custom_call.1} parent=39 // pred_region
          %s462 = smul.u32 2, %s21
          %s464 = ssub.s32 256, 256
          %465 = vsyncadd [#allocation5], %s464
          %s466 = smul.addr %s462, 128
          %s467 = scalar_lea.hbm %s5, %s466
          %s468 = sshll.u32 [#allocation4], 4
          %s469 = int_to_ptr.vmem [resolvable:$true] %s468
          %474 = dma.vmem_to_hbm [thread:$0]  %s469, 256, %s467, [#allocation5], 128, 128, 8
        $region52: #{tpu_custom_call.1} parent=39 // pred_fallthru
          _
        // Predicated region
        $region53: #{tpu_custom_call.1} parent=39 // pred_check
          %p475 = pneg %p167
        $region54: #{tpu_custom_call.1} parent=39 // pred_check_branch
          %477 = sbr.rel (%p475) target = $region56
        $region55: #{tpu_custom_call.1} parent=39 // pred_region
          %478 = dma.done [#allocation5], 256
        $region56: #{tpu_custom_call.1} parent=39 // pred_fallthru
          _
      $region40: #{tpu_custom_call.1} parent=5 // pred_fallthru
        _
      %p479 = scmp.le.s32.totalorder 2, %s12
      // Predicated region
      $region57: #{tpu_custom_call.1} parent=5 // pred_check
        %p480 = pneg %p479
      $region58: #{tpu_custom_call.1} parent=5 // pred_check_branch
        %482 = sbr.rel (%p480) target = $region60
      $region59: #{tpu_custom_call.1} parent=5 // pred_region
        %s483 = ssub.s32 %s12, 2
      $region60: #{tpu_custom_call.1} parent=5 // pred_fallthru
        _
    $region6: #{tpu_custom_call.1} parent=1 // loop_footer
      %s16 = sadd.s32 1, %s12
    $region7: #{tpu_custom_call.1} parent=1 // loop_footer_branch
      %11 = sbr.rel target = $region3
    $region8: #{tpu_custom_call.1} parent=1 // loop_exit
      _
    %484 = vsyncpa [#allocation5], 1
    %s485 = scalar_lea.sflag [#allocation5], 1
    %486 = vsyncpa %s485, 1

</llo_original>
